<compile_context>
chip_gen: v7x
topology: tpu7x:2x2x1
jax: 0.10.0
libtpu: 0.0.40
codegen_flags: <defaults>
</compile_context>

<pallas_src>
import math

import jax
import jax.numpy as jnp
from jax.experimental import pallas as pl
from jax.experimental.pallas import tpu as pltpu


def _round_up(n, m):
    return ((n + m - 1) // m) * m


# --------------------------------------------------------------------------- kernel
def mlp_kernel(x_ref, w1_ref, b1_ref, w2_ref, b2_ref, w3_ref, b3_ref,
               w4_ref, b4_ref, o_ref):
    cdt = w1_ref.dtype                       # matmul operand dtype (bf16 or f32)
    out_cols = o_ref.shape[-1]               # true output width (<= padded OUT_P)

    # Hoist bias reads once per grid step (avoid repeated broadcast_in_dim).
    b1 = b1_ref[...]
    b2 = b2_ref[...]
    b3 = b3_ref[...]
    b4 = b4_ref[...]

    # x arrives at its true feature width and dtype; cast in-kernel (cheap VPU op).
    x = x_ref[...].astype(cdt)

    # Layer 1: Linear + ReLU   (f32 MXU accumulation, f32 elementwise)
    h = jnp.dot(x, w1_ref[...], preferred_element_type=jnp.float32)
    h = jnp.maximum(h + b1, 0.0)
    # Layer 2: Linear + ReLU
    h = jnp.dot(h.astype(cdt), w2_ref[...], preferred_element_type=jnp.float32)
    h = jnp.maximum(h + b2, 0.0)
    # Layer 3: Linear + ReLU
    h = jnp.dot(h.astype(cdt), w3_ref[...], preferred_element_type=jnp.float32)
    h = jnp.maximum(h + b3, 0.0)
    # Layer 4: Linear + Sigmoid (exp + approx reciprocal -> EUP slot)
    logits = jnp.dot(h.astype(cdt), w4_ref[...],
                     preferred_element_type=jnp.float32) + b4
    logits = logits[:, :out_cols]            # drop padded output columns before store
    sig = pl.reciprocal(1.0 + jnp.exp(-logits), approx=True)
    o_ref[...] = sig.astype(o_ref.dtype)


# ------------------------------------------------------------------ one-time param prep
def prepare_params(params, *, compute_dtype=jnp.bfloat16, hidden_align=128):
    """Pad hidden/output dims to lane multiples and cast matmul operands ONCE.

    `hidden_align=256` can help on v6e/v7x once the kernel is MXU-bound
    (hidden >= ~1-2k with big batches); keep 128 otherwise and on v5e.
    """
    in_size, hidden = params["w1"].shape
    out_size = params["w4"].shape[1]
    H_P = _round_up(hidden, hidden_align)
    OUT_P = _round_up(out_size, 128)

    def pad(a, rows, cols, dtype):
        a = jnp.pad(a, ((0, rows - a.shape[0]), (0, cols - a.shape[1])))
        return a.astype(dtype)

    return {
        "in_size": in_size,
        "out_size": out_size,
        # w1 keeps its true row count (block 2nd-minor dim == full dim is legal),
        # so x never needs feature padding.
        "w1": pad(params["w1"], in_size, H_P, compute_dtype),
        "b1": pad(params["b1"], 1, H_P, jnp.float32),
        "w2": pad(params["w2"], H_P, H_P, compute_dtype),
        "b2": pad(params["b2"], 1, H_P, jnp.float32),
        "w3": pad(params["w3"], H_P, H_P, compute_dtype),
        "b3": pad(params["b3"], 1, H_P, jnp.float32),
        "w4": pad(params["w4"], H_P, OUT_P, compute_dtype),
        "b4": pad(params["b4"], 1, OUT_P, jnp.float32),
    }


def _pick_tile_b(batch, tile_b):
    """Large tiles amortize the ~0.35us per-grid-step overhead; but keep >=2 grid
    steps when the batch allows so v7x's 2 TensorCores both get work."""
    b8 = _round_up(max(batch, 1), 8)
    t = min(_round_up(tile_b, 8), b8)
    if pl.cdiv(b8, t) < 2 and b8 >= 16:
        t = _round_up(pl.cdiv(b8, 2), 8)
    return t


_RESIDENT_PIPELINE_MODE = "unresolved"   # "single" | "double", resolved on first call


# ------------------------------------------------------------------------- forward
def triple_layer_binary_classifier(x, prepared, *, tile_b=1024):
    """x: (B, input_size); `prepared` from prepare_params()."""
    global _RESIDENT_PIPELINE_MODE

    B, in_size = x.shape
    assert in_size == prepared["in_size"]
    out_size = prepared["out_size"]
    w1, b1 = prepared["w1"], prepared["b1"]
    w2, b2 = prepared["w2"], prepared["b2"]
    w3, b3 = prepared["w3"], prepared["b3"]
    w4, b4 = prepared["w4"], prepared["b4"]
    H_P, OUT_P = w2.shape[0], w4.shape[1]

    TILE_B = _pick_tile_b(B, tile_b)
    grid = (pl.cdiv(B, TILE_B),)

    weights = (w1, b1, w2, b2, w3, b3, w4, b4)
    weight_bytes = sum(int(a.size) * a.dtype.itemsize for a in weights)
    tile_io_bytes = TILE_B * (in_size * x.dtype.itemsize + out_size * 4)
    interm_bytes = 2 * TILE_B * H_P * 4           # rough: f32 activations in VMEM
    vmem_limit = int(min(max(2 * (2 * weight_bytes + 2 * tile_io_bytes + interm_bytes),
                             32 << 20), 64 << 20))

    flops = 2 * B * (in_size * H_P + 2 * H_P * H_P + H_P * OUT_P)
    bytes_accessed = (int(x.size) * x.dtype.itemsize + weight_bytes + B * out_size * 4)
    cost = pl.CostEstimate(flops=int(flops), transcendentals=int(2 * B * out_size),
                           bytes_accessed=int(bytes_accessed))

    def resident(a, mode):
        # Constant block index -> VMEM-resident across all grid steps.
        if mode is None:
            return pl.BlockSpec(a.shape, lambda i: (0, 0))
        return pl.BlockSpec(a.shape, lambda i: (0, 0), pipeline_mode=mode)

    def run(mode):
        return pl.pallas_call(
            mlp_kernel,
            out_shape=jax.ShapeDtypeStruct((B, out_size), jnp.float32),
            grid=grid,
            in_specs=[
                # x tiled over batch at its TRUE feature width (no host pad/cast).
                pl.BlockSpec((TILE_B, in_size), lambda i: (i, 0)),
                resident(w1, mode), resident(b1, mode),
                resident(w2, mode), resident(b2, mode),
                resident(w3, mode), resident(b3, mode),
                resident(w4, mode), resident(b4, mode),
            ],
            # True-width output: masked vst but ~OUT_P/out_size less writeback DMA.
            out_specs=pl.BlockSpec((TILE_B, out_size), lambda i: (i, 0)),
            compiler_params=pltpu.CompilerParams(
                dimension_semantics=("parallel",),     # megacore split on v7x
                vmem_limit_bytes=vmem_limit),
            cost_estimate=cost,
        )(x, w1, b1, w2, b2, w3, b3, w4, b4)

    # TODO(synk): if hidden grows so large that resident weights exceed v7x's 64 MiB
    # VMEM, add an 'arbitrary' hidden grid axis instead of keeping all W resident.
    if _RESIDENT_PIPELINE_MODE == "unresolved":
        try:
            out = run(pl.Buffered(1))       # resident operands never change: 1 buffer
            _RESIDENT_PIPELINE_MODE = "single"
            return out
        except Exception:
            _RESIDENT_PIPELINE_MODE = "double"
            return run(None)
    return run(pl.Buffered(1) if _RESIDENT_PIPELINE_MODE == "single" else None)


# ------------------------------------------------------------------- init + reference
def xavier_uniform(key, fan_in, fan_out):
    # torch.nn.init.xavier_uniform_: U(-a, a), a = sqrt(6 / (fan_in + fan_out)).
    bound = math.sqrt(6.0 / (fan_in + fan_out))
    return jax.random.uniform(key, (fan_in, fan_out), jnp.float32, -bound, bound)


def init_params(key, input_size, hidden_size, output_size):
    k1, k2, k3, k4 = jax.random.split(key, 4)
    return {
        "w1": xavier_uniform(k1, input_size, hidden_size),
        "b1": jnp.zeros((1, hidden_size), jnp.float32),
        "w2": xavier_uniform(k2, hidden_size, hidden_size),
        "b2": jnp.zeros((1, hidden_size), jnp.float32),
        "w3": xavier_uniform(k3, hidden_size, hidden_size),
        "b3": jnp.zeros((1, hidden_size), jnp.float32),
        "w4": xavier_uniform(k4, hidden_size, output_size),
        "b4": jnp.zeros((1, output_size), jnp.float32),
    }


def reference_forward(x, p):
    h = jnp.maximum(x @ p["w1"] + p["b1"], 0.0)
    h = jnp.maximum(h @ p["w2"] + p["b2"], 0.0)
    h = jnp.maximum(h @ p["w3"] + p["b3"], 0.0)
    return jax.nn.sigmoid(h @ p["w4"] + p["b4"])


if __name__ == "__main__":
    input_size, hidden_size, output_size = 16, 32, 1

    key = jax.random.PRNGKey(0)
    k_params, k_x = jax.random.split(key)
    params = init_params(k_params, input_size, hidden_size, output_size)

    prepared_bf16 = prepare_params(params, compute_dtype=jnp.bfloat16)  # default path
    prepared_f32 = prepare_params(params, compute_dtype=jnp.float32)

    # batch=8: primary case. batch=48: multi-step grid (2 tiles, megacore split).
    # batch=20: ragged last tile (Pallas clips OOB reads/writes; padded rows discarded).
    for batch in (8, 48, 20):
        x = jax.random.normal(jax.random.fold_in(k_x, batch),
                              (batch, input_size), jnp.float32)
        ref = reference_forward(x, params)

        out_bf16 = jax.block_until_ready(
            triple_layer_binary_classifier(x, prepared_bf16))
        assert out_bf16.shape == (batch, output_size)
        assert jnp.allclose(out_bf16, ref, atol=3e-2), f"bf16 mismatch, batch={batch}"

        out_f32 = jax.block_until_ready(
            triple_layer_binary_classifier(x, prepared_f32))
        assert out_f32.shape == (batch, output_size)
        assert jnp.allclose(out_f32, ref, atol=1e-2), f"f32 mismatch, batch={batch}"

    print("KERNEL_OK")
</pallas_src>

<mosaic_0001>
module attributes {stable_mosaic.version = 11 : i64} {
  func.func @mlp_kernel(%arg0: i32, %arg1: memref<8x16xf32, #tpu.memory_space<vmem>>, %arg2: memref<16x128xbf16, #tpu.memory_space<vmem>>, %arg3: memref<1x128xf32, #tpu.memory_space<vmem>>, %arg4: memref<128x128xbf16, #tpu.memory_space<vmem>>, %arg5: memref<1x128xf32, #tpu.memory_space<vmem>>, %arg6: memref<128x128xbf16, #tpu.memory_space<vmem>>, %arg7: memref<1x128xf32, #tpu.memory_space<vmem>>, %arg8: memref<128x128xbf16, #tpu.memory_space<vmem>>, %arg9: memref<1x128xf32, #tpu.memory_space<vmem>>, %arg10: memref<8x1xf32, #tpu.memory_space<vmem>>) attributes {dimension_semantics = [#tpu.dimension_semantics<parallel>], iteration_bounds = array<i64: 1>, scalar_prefetch = 0 : i64, scratch_operands = 0 : i64, tpu.core_type = #tpu.core_type<tc>, window_params = [{transform_indices = @transform_0, window_bounds = array<i64: 8, 16>}, {pipeline_mode = #tpu.pipeline_mode<synchronous>, transform_indices = @transform_1, window_bounds = array<i64: 16, 128>}, {pipeline_mode = #tpu.pipeline_mode<synchronous>, transform_indices = @transform_2, window_bounds = array<i64: 1, 128>}, {pipeline_mode = #tpu.pipeline_mode<synchronous>, transform_indices = @transform_3, window_bounds = array<i64: 128, 128>}, {pipeline_mode = #tpu.pipeline_mode<synchronous>, transform_indices = @transform_4, window_bounds = array<i64: 1, 128>}, {pipeline_mode = #tpu.pipeline_mode<synchronous>, transform_indices = @transform_5, window_bounds = array<i64: 128, 128>}, {pipeline_mode = #tpu.pipeline_mode<synchronous>, transform_indices = @transform_6, window_bounds = array<i64: 1, 128>}, {pipeline_mode = #tpu.pipeline_mode<synchronous>, transform_indices = @transform_7, window_bounds = array<i64: 128, 128>}, {pipeline_mode = #tpu.pipeline_mode<synchronous>, transform_indices = @transform_8, window_bounds = array<i64: 1, 128>}, {transform_indices = @transform_9, window_bounds = array<i64: 8, 1>}]} {
    %c0 = arith.constant 0 : index
    %c0_0 = arith.constant 0 : index
    %0 = vector.load %arg3[%c0, %c0_0] : memref<1x128xf32, #tpu.memory_space<vmem>>, vector<1x128xf32>
    %c0_1 = arith.constant 0 : index
    %c0_2 = arith.constant 0 : index
    %1 = vector.load %arg5[%c0_1, %c0_2] : memref<1x128xf32, #tpu.memory_space<vmem>>, vector<1x128xf32>
    %c0_3 = arith.constant 0 : index
    %c0_4 = arith.constant 0 : index
    %2 = vector.load %arg7[%c0_3, %c0_4] : memref<1x128xf32, #tpu.memory_space<vmem>>, vector<1x128xf32>
    %c0_5 = arith.constant 0 : index
    %c0_6 = arith.constant 0 : index
    %3 = vector.load %arg9[%c0_5, %c0_6] : memref<1x128xf32, #tpu.memory_space<vmem>>, vector<1x128xf32>
    %c0_7 = arith.constant 0 : index
    %c0_8 = arith.constant 0 : index
    %4 = vector.load %arg1[%c0_7, %c0_8] : memref<8x16xf32, #tpu.memory_space<vmem>>, vector<8x16xf32>
    %5 = arith.truncf %4 : vector<8x16xf32> to vector<8x16xbf16>
    %c0_9 = arith.constant 0 : index
    %c0_10 = arith.constant 0 : index
    %6 = vector.load %arg2[%c0_9, %c0_10] : memref<16x128xbf16, #tpu.memory_space<vmem>>, vector<16x128xbf16>
    %cst = arith.constant dense<0.000000e+00> : vector<8x128xf32>
    %7 = tpu.matmul %5, %6, %cst {dimension_numbers = #tpu.dot_dimension_numbers<[1], [0], [0], [1], [0, 0, 1, 1], [], []>} : vector<8x16xbf16>, vector<16x128xbf16>, vector<8x128xf32> -> vector<8x128xf32>
    %8 = vector.broadcast %0 : vector<1x128xf32> to vector<8x128xf32>
    %9 = arith.addf %7, %8 : vector<8x128xf32>
    %cst_11 = arith.constant 0.000000e+00 : f32
    %10 = vector.broadcast %cst_11 : f32 to vector<8x128xf32>
    %11 = arith.maximumf %9, %10 : vector<8x128xf32>
    %12 = arith.truncf %11 : vector<8x128xf32> to vector<8x128xbf16>
    %c0_12 = arith.constant 0 : index
    %c0_13 = arith.constant 0 : index
    %13 = vector.load %arg4[%c0_12, %c0_13] : memref<128x128xbf16, #tpu.memory_space<vmem>>, vector<128x128xbf16>
    %cst_14 = arith.constant dense<0.000000e+00> : vector<8x128xf32>
    %14 = tpu.matmul %12, %13, %cst_14 {dimension_numbers = #tpu.dot_dimension_numbers<[1], [0], [0], [1], [0, 0, 1, 1], [], []>} : vector<8x128xbf16>, vector<128x128xbf16>, vector<8x128xf32> -> vector<8x128xf32>
    %15 = vector.broadcast %1 : vector<1x128xf32> to vector<8x128xf32>
    %16 = arith.addf %14, %15 : vector<8x128xf32>
    %cst_15 = arith.constant 0.000000e+00 : f32
    %17 = vector.broadcast %cst_15 : f32 to vector<8x128xf32>
    %18 = arith.maximumf %16, %17 : vector<8x128xf32>
    %19 = arith.truncf %18 : vector<8x128xf32> to vector<8x128xbf16>
    %c0_16 = arith.constant 0 : index
    %c0_17 = arith.constant 0 : index
    %20 = vector.load %arg6[%c0_16, %c0_17] : memref<128x128xbf16, #tpu.memory_space<vmem>>, vector<128x128xbf16>
    %cst_18 = arith.constant dense<0.000000e+00> : vector<8x128xf32>
    %21 = tpu.matmul %19, %20, %cst_18 {dimension_numbers = #tpu.dot_dimension_numbers<[1], [0], [0], [1], [0, 0, 1, 1], [], []>} : vector<8x128xbf16>, vector<128x128xbf16>, vector<8x128xf32> -> vector<8x128xf32>
    %22 = vector.broadcast %2 : vector<1x128xf32> to vector<8x128xf32>
    %23 = arith.addf %21, %22 : vector<8x128xf32>
    %cst_19 = arith.constant 0.000000e+00 : f32
    %24 = vector.broadcast %cst_19 : f32 to vector<8x128xf32>
    %25 = arith.maximumf %23, %24 : vector<8x128xf32>
    %26 = arith.truncf %25 : vector<8x128xf32> to vector<8x128xbf16>
    %c0_20 = arith.constant 0 : index
    %c0_21 = arith.constant 0 : index
    %27 = vector.load %arg8[%c0_20, %c0_21] : memref<128x128xbf16, #tpu.memory_space<vmem>>, vector<128x128xbf16>
    %cst_22 = arith.constant dense<0.000000e+00> : vector<8x128xf32>
    %28 = tpu.matmul %26, %27, %cst_22 {dimension_numbers = #tpu.dot_dimension_numbers<[1], [0], [0], [1], [0, 0, 1, 1], [], []>} : vector<8x128xbf16>, vector<128x128xbf16>, vector<8x128xf32> -> vector<8x128xf32>
    %29 = vector.broadcast %3 : vector<1x128xf32> to vector<8x128xf32>
    %30 = arith.addf %28, %29 : vector<8x128xf32>
    %31 = vector.extract_strided_slice %30 {offsets = [0, 0], sizes = [8, 1], strides = [1, 1]} : vector<8x128xf32> to vector<8x1xf32>
    %cst_23 = arith.constant 0.000000e+00 : f32
    %32 = vector.broadcast %cst_23 : f32 to vector<8x1xf32>
    %33 = arith.subf %32, %31 : vector<8x1xf32>
    %34 = math.exp %33 : vector<8x1xf32>
    %cst_24 = arith.constant 1.000000e+00 : f32
    %35 = vector.broadcast %cst_24 : f32 to vector<8x1xf32>
    %36 = arith.addf %35, %34 : vector<8x1xf32>
    %37 = tpu.reciprocal %36 {approx = true} : vector<8x1xf32> -> vector<8x1xf32>
    %c0_25 = arith.constant 0 : index
    %c0_26 = arith.constant 0 : index
    %38 = vector.load %arg10[%c0_25, %c0_26] : memref<8x1xf32, #tpu.memory_space<vmem>>, vector<8x1xf32>
    tpu.vector_store %arg10[%c0_25, %c0_26], %37 {strides = array<i32>} : memref<8x1xf32, #tpu.memory_space<vmem>>, vector<8x1xf32>,
    return
  }
  func.func @transform_0(%arg0: i32) -> (i32, i32) {
    %c0_i32 = arith.constant 0 : i32
    %c0_i32_0 = arith.constant 0 : i32
    return %arg0, %c0_i32 : i32, i32
  }
  func.func @transform_1(%arg0: i32) -> (i32, i32) {
    %c0_i32 = arith.constant 0 : i32
    %c0_i32_0 = arith.constant 0 : i32
    %c0_i32_1 = arith.constant 0 : i32
    return %c0_i32, %c0_i32_0 : i32, i32
  }
  func.func @transform_2(%arg0: i32) -> (i32, i32) {
    %c0_i32 = arith.constant 0 : i32
    %c0_i32_0 = arith.constant 0 : i32
    %c0_i32_1 = arith.constant 0 : i32
    return %c0_i32, %c0_i32_0 : i32, i32
  }
  func.func @transform_3(%arg0: i32) -> (i32, i32) {
    %c0_i32 = arith.constant 0 : i32
    %c0_i32_0 = arith.constant 0 : i32
    %c0_i32_1 = arith.constant 0 : i32
    return %c0_i32, %c0_i32_0 : i32, i32
  }
  func.func @transform_4(%arg0: i32) -> (i32, i32) {
    %c0_i32 = arith.constant 0 : i32
    %c0_i32_0 = arith.constant 0 : i32
    %c0_i32_1 = arith.constant 0 : i32
    return %c0_i32, %c0_i32_0 : i32, i32
  }
  func.func @transform_5(%arg0: i32) -> (i32, i32) {
    %c0_i32 = arith.constant 0 : i32
    %c0_i32_0 = arith.constant 0 : i32
    %c0_i32_1 = arith.constant 0 : i32
    return %c0_i32, %c0_i32_0 : i32, i32
  }
  func.func @transform_6(%arg0: i32) -> (i32, i32) {
    %c0_i32 = arith.constant 0 : i32
    %c0_i32_0 = arith.constant 0 : i32
    %c0_i32_1 = arith.constant 0 : i32
    return %c0_i32, %c0_i32_0 : i32, i32
  }
  func.func @transform_7(%arg0: i32) -> (i32, i32) {
    %c0_i32 = arith.constant 0 : i32
    %c0_i32_0 = arith.constant 0 : i32
    %c0_i32_1 = arith.constant 0 : i32
    return %c0_i32, %c0_i32_0 : i32, i32
  }
  func.func @transform_8(%arg0: i32) -> (i32, i32) {
    %c0_i32 = arith.constant 0 : i32
    %c0_i32_0 = arith.constant 0 : i32
    %c0_i32_1 = arith.constant 0 : i32
    return %c0_i32, %c0_i32_0 : i32, i32
  }
  func.func @transform_9(%arg0: i32) -> (i32, i32) {
    %c0_i32 = arith.constant 0 : i32
    %c0_i32_0 = arith.constant 0 : i32
    return %arg0, %c0_i32 : i32, i32
  }
}

module attributes {stable_mosaic.version = 11 : i64} {
  func.func @mlp_kernel(%arg0: i32, %arg1: memref<8x16xf32, #tpu.memory_space<vmem>>, %arg2: memref<16x128xbf16, #tpu.memory_space<vmem>>, %arg3: memref<1x128xf32, #tpu.memory_space<vmem>>, %arg4: memref<128x128xbf16, #tpu.memory_space<vmem>>, %arg5: memref<1x128xf32, #tpu.memory_space<vmem>>, %arg6: memref<128x128xbf16, #tpu.memory_space<vmem>>, %arg7: memref<1x128xf32, #tpu.memory_space<vmem>>, %arg8: memref<128x128xbf16, #tpu.memory_space<vmem>>, %arg9: memref<1x128xf32, #tpu.memory_space<vmem>>, %arg10: memref<8x1xf32, #tpu.memory_space<vmem>>) attributes {dimension_semantics = [#tpu.dimension_semantics<parallel>], iteration_bounds = array<i64: 1>, scalar_prefetch = 0 : i64, scratch_operands = 0 : i64, tpu.core_type = #tpu.core_type<tc>, window_params = [{transform_indices = @transform_0, window_bounds = array<i64: 8, 16>}, {pipeline_mode = #tpu.pipeline_mode<synchronous>, transform_indices = @transform_1, window_bounds = array<i64: 16, 128>}, {pipeline_mode = #tpu.pipeline_mode<synchronous>, transform_indices = @transform_2, window_bounds = array<i64: 1, 128>}, {pipeline_mode = #tpu.pipeline_mode<synchronous>, transform_indices = @transform_3, window_bounds = array<i64: 128, 128>}, {pipeline_mode = #tpu.pipeline_mode<synchronous>, transform_indices = @transform_4, window_bounds = array<i64: 1, 128>}, {pipeline_mode = #tpu.pipeline_mode<synchronous>, transform_indices = @transform_5, window_bounds = array<i64: 128, 128>}, {pipeline_mode = #tpu.pipeline_mode<synchronous>, transform_indices = @transform_6, window_bounds = array<i64: 1, 128>}, {pipeline_mode = #tpu.pipeline_mode<synchronous>, transform_indices = @transform_7, window_bounds = array<i64: 128, 128>}, {pipeline_mode = #tpu.pipeline_mode<synchronous>, transform_indices = @transform_8, window_bounds = array<i64: 1, 128>}, {transform_indices = @transform_9, window_bounds = array<i64: 8, 1>}]} {
    %c0 = arith.constant 0 : index
    %c0_0 = arith.constant 0 : index
    %0 = vector.load %arg3[%c0, %c0_0] : memref<1x128xf32, #tpu.memory_space<vmem>>, vector<1x128xf32>
    %c0_1 = arith.constant 0 : index
    %c0_2 = arith.constant 0 : index
    %1 = vector.load %arg5[%c0_1, %c0_2] : memref<1x128xf32, #tpu.memory_space<vmem>>, vector<1x128xf32>
    %c0_3 = arith.constant 0 : index
    %c0_4 = arith.constant 0 : index
    %2 = vector.load %arg7[%c0_3, %c0_4] : memref<1x128xf32, #tpu.memory_space<vmem>>, vector<1x128xf32>
    %c0_5 = arith.constant 0 : index
    %c0_6 = arith.constant 0 : index
    %3 = vector.load %arg9[%c0_5, %c0_6] : memref<1x128xf32, #tpu.memory_space<vmem>>, vector<1x128xf32>
    %c0_7 = arith.constant 0 : index
    %c0_8 = arith.constant 0 : index
    %4 = vector.load %arg1[%c0_7, %c0_8] : memref<8x16xf32, #tpu.memory_space<vmem>>, vector<8x16xf32>
    %5 = arith.truncf %4 : vector<8x16xf32> to vector<8x16xbf16>
    %c0_9 = arith.constant 0 : index
    %c0_10 = arith.constant 0 : index
    %6 = vector.load %arg2[%c0_9, %c0_10] : memref<16x128xbf16, #tpu.memory_space<vmem>>, vector<16x128xbf16>
    %cst = arith.constant dense<0.000000e+00> : vector<8x128xf32>
    %7 = tpu.matmul %5, %6, %cst {dimension_numbers = #tpu.dot_dimension_numbers<[1], [0], [0], [1], [0, 0, 1, 1], [], []>} : vector<8x16xbf16>, vector<16x128xbf16>, vector<8x128xf32> -> vector<8x128xf32>
    %8 = vector.broadcast %0 : vector<1x128xf32> to vector<8x128xf32>
    %9 = arith.addf %7, %8 : vector<8x128xf32>
    %cst_11 = arith.constant 0.000000e+00 : f32
    %10 = vector.broadcast %cst_11 : f32 to vector<8x128xf32>
    %11 = arith.maximumf %9, %10 : vector<8x128xf32>
    %12 = arith.truncf %11 : vector<8x128xf32> to vector<8x128xbf16>
    %c0_12 = arith.constant 0 : index
    %c0_13 = arith.constant 0 : index
    %13 = vector.load %arg4[%c0_12, %c0_13] : memref<128x128xbf16, #tpu.memory_space<vmem>>, vector<128x128xbf16>
    %cst_14 = arith.constant dense<0.000000e+00> : vector<8x128xf32>
    %14 = tpu.matmul %12, %13, %cst_14 {dimension_numbers = #tpu.dot_dimension_numbers<[1], [0], [0], [1], [0, 0, 1, 1], [], []>} : vector<8x128xbf16>, vector<128x128xbf16>, vector<8x128xf32> -> vector<8x128xf32>
    %15 = vector.broadcast %1 : vector<1x128xf32> to vector<8x128xf32>
    %16 = arith.addf %14, %15 : vector<8x128xf32>
    %cst_15 = arith.constant 0.000000e+00 : f32
    %17 = vector.broadcast %cst_15 : f32 to vector<8x128xf32>
    %18 = arith.maximumf %16, %17 : vector<8x128xf32>
    %19 = arith.truncf %18 : vector<8x128xf32> to vector<8x128xbf16>
    %c0_16 = arith.constant 0 : index
    %c0_17 = arith.constant 0 : index
    %20 = vector.load %arg6[%c0_16, %c0_17] : memref<128x128xbf16, #tpu.memory_space<vmem>>, vector<128x128xbf16>
    %cst_18 = arith.constant dense<0.000000e+00> : vector<8x128xf32>
    %21 = tpu.matmul %19, %20, %cst_18 {dimension_numbers = #tpu.dot_dimension_numbers<[1], [0], [0], [1], [0, 0, 1, 1], [], []>} : vector<8x128xbf16>, vector<128x128xbf16>, vector<8x128xf32> -> vector<8x128xf32>
    %22 = vector.broadcast %2 : vector<1x128xf32> to vector<8x128xf32>
    %23 = arith.addf %21, %22 : vector<8x128xf32>
    %cst_19 = arith.constant 0.000000e+00 : f32
    %24 = vector.broadcast %cst_19 : f32 to vector<8x128xf32>
    %25 = arith.maximumf %23, %24 : vector<8x128xf32>
    %26 = arith.truncf %25 : vector<8x128xf32> to vector<8x128xbf16>
    %c0_20 = arith.constant 0 : index
    %c0_21 = arith.constant 0 : index
    %27 = vector.load %arg8[%c0_20, %c0_21] : memref<128x128xbf16, #tpu.memory_space<vmem>>, vector<128x128xbf16>
    %cst_22 = arith.constant dense<0.000000e+00> : vector<8x128xf32>
    %28 = tpu.matmul %26, %27, %cst_22 {dimension_numbers = #tpu.dot_dimension_numbers<[1], [0], [0], [1], [0, 0, 1, 1], [], []>} : vector<8x128xbf16>, vector<128x128xbf16>, vector<8x128xf32> -> vector<8x128xf32>
    %29 = vector.broadcast %3 : vector<1x128xf32> to vector<8x128xf32>
    %30 = arith.addf %28, %29 : vector<8x128xf32>
    %31 = vector.extract_strided_slice %30 {offsets = [0, 0], sizes = [8, 1], strides = [1, 1]} : vector<8x128xf32> to vector<8x1xf32>
    %cst_23 = arith.constant 0.000000e+00 : f32
    %32 = vector.broadcast %cst_23 : f32 to vector<8x1xf32>
    %33 = arith.subf %32, %31 : vector<8x1xf32>
    %34 = math.exp %33 : vector<8x1xf32>
    %cst_24 = arith.constant 1.000000e+00 : f32
    %35 = vector.broadcast %cst_24 : f32 to vector<8x1xf32>
    %36 = arith.addf %35, %34 : vector<8x1xf32>
    %37 = tpu.reciprocal %36 {approx = true} : vector<8x1xf32> -> vector<8x1xf32>
    %c0_25 = arith.constant 0 : index
    %c0_26 = arith.constant 0 : index
    %38 = vector.load %arg10[%c0_25, %c0_26] : memref<8x1xf32, #tpu.memory_space<vmem>>, vector<8x1xf32>
    tpu.vector_store %arg10[%c0_25, %c0_26], %37 {strides = array<i32>} : memref<8x1xf32, #tpu.memory_space<vmem>>, vector<8x1xf32>,
    return
  }
  func.func @transform_0(%arg0: i32) -> (i32, i32) {
    %c0_i32 = arith.constant 0 : i32
    %c0_i32_0 = arith.constant 0 : i32
    return %arg0, %c0_i32 : i32, i32
  }
  func.func @transform_1(%arg0: i32) -> (i32, i32) {
    %c0_i32 = arith.constant 0 : i32
    %c0_i32_0 = arith.constant 0 : i32
    %c0_i32_1 = arith.constant 0 : i32
    return %c0_i32, %c0_i32_0 : i32, i32
  }
  func.func @transform_2(%arg0: i32) -> (i32, i32) {
    %c0_i32 = arith.constant 0 : i32
    %c0_i32_0 = arith.constant 0 : i32
    %c0_i32_1 = arith.constant 0 : i32
    return %c0_i32, %c0_i32_0 : i32, i32
  }
  func.func @transform_3(%arg0: i32) -> (i32, i32) {
    %c0_i32 = arith.constant 0 : i32
    %c0_i32_0 = arith.constant 0 : i32
    %c0_i32_1 = arith.constant 0 : i32
    return %c0_i32, %c0_i32_0 : i32, i32
  }
  func.func @transform_4(%arg0: i32) -> (i32, i32) {
    %c0_i32 = arith.constant 0 : i32
    %c0_i32_0 = arith.constant 0 : i32
    %c0_i32_1 = arith.constant 0 : i32
    return %c0_i32, %c0_i32_0 : i32, i32
  }
  func.func @transform_5(%arg0: i32) -> (i32, i32) {
    %c0_i32 = arith.constant 0 : i32
    %c0_i32_0 = arith.constant 0 : i32
    %c0_i32_1 = arith.constant 0 : i32
    return %c0_i32, %c0_i32_0 : i32, i32
  }
  func.func @transform_6(%arg0: i32) -> (i32, i32) {
    %c0_i32 = arith.constant 0 : i32
    %c0_i32_0 = arith.constant 0 : i32
    %c0_i32_1 = arith.constant 0 : i32
    return %c0_i32, %c0_i32_0 : i32, i32
  }
  func.func @transform_7(%arg0: i32) -> (i32, i32) {
    %c0_i32 = arith.constant 0 : i32
    %c0_i32_0 = arith.constant 0 : i32
    %c0_i32_1 = arith.constant 0 : i32
    return %c0_i32, %c0_i32_0 : i32, i32
  }
  func.func @transform_8(%arg0: i32) -> (i32, i32) {
    %c0_i32 = arith.constant 0 : i32
    %c0_i32_0 = arith.constant 0 : i32
    %c0_i32_1 = arith.constant 0 : i32
    return %c0_i32, %c0_i32_0 : i32, i32
  }
  func.func @transform_9(%arg0: i32) -> (i32, i32) {
    %c0_i32 = arith.constant 0 : i32
    %c0_i32_0 = arith.constant 0 : i32
    return %arg0, %c0_i32 : i32, i32
  }
}

</mosaic_0001>

<llo_original>
// kernel: tpu_custom_call.1
$region0: #{tpu_custom_call.1}
  #allocation0 [shape = 'u32[]', space=smem, size = 0x4, offset = 0x4, fixed_abs, tag = 'smem constant byte address 0x4 - core index']
  #allocation1 [shape = 'u32[144,128]{1,0:T(1,128)}', space=vmem, size = 0x12000, scoped, tag = 'internal scratch']
  %s0 = inlined_call_operand.hbm [shape: f32[8,16], index: 0, kind: input, shape index: {}]
  %s1 = inlined_call_operand.hbm [shape: bf16[16,128], index: 1, kind: input, shape index: {}]
  %s2 = inlined_call_operand.vmem [shape: f32[1,128], index: 2, kind: input, shape index: {}]
  %s3 = inlined_call_operand.hbm [shape: bf16[128,128], index: 3, kind: input, shape index: {}]
  %s4 = inlined_call_operand.vmem [shape: f32[1,128], index: 4, kind: input, shape index: {}]
  %s5 = inlined_call_operand.hbm [shape: bf16[128,128], index: 5, kind: input, shape index: {}]
  %s6 = inlined_call_operand.vmem [shape: f32[1,128], index: 6, kind: input, shape index: {}]
  %s7 = inlined_call_operand.hbm [shape: bf16[128,128], index: 7, kind: input, shape index: {}]
  %s8 = inlined_call_operand.vmem [shape: f32[1,128], index: 8, kind: input, shape index: {}]
  %s9 = inlined_call_operand.vmem [shape: f32[8,1], index: 9, kind: output, shape index: {}]
  %s10 = sld [smem:[#allocation0]]
  $region66: #{tpu_custom_call.1} parent=0
    _
  %s12 = ssub.s32 1, %s10
  %s13 = scalar_select 0, %s12, %s10
  $region1: #{tpu_custom_call.1} parent=0
    #allocation2 [shape = 'u8[4096]{0}', space=vmem, size = 0x1000, scoped, tag = 'input window, operand 0, single buffered']
    #allocation3 [shape = 's32[1]{0}', space=sflag, size = 0x4, scoped, tag = 'scoped memory for tpu_custom_call.1']
    #allocation4 [shape = 'u8[4096]{0}', space=vmem, size = 0x1000, scoped, tag = 'input window, operand 1, single buffered']
    #allocation5 [shape = 's32[1]{0}', space=sflag, size = 0x4, scoped, tag = 'scoped memory for tpu_custom_call.1']
    #allocation6 [shape = 'u8[32768]{0}', space=vmem, size = 0x8000, scoped, tag = 'input window, operand 3, single buffered']
    #allocation7 [shape = 'u8[32768]{0}', space=vmem, size = 0x8000, scoped, tag = 'input window, operand 5, single buffered']
    #allocation8 [shape = 's32[1]{0}', space=sflag, size = 0x4, scoped, tag = 'scoped memory for tpu_custom_call.1']
    #allocation9 [shape = 'u8[32768]{0}', space=vmem, size = 0x8000, scoped, tag = 'input window, operand 7, single buffered']
    %14 = vsyncpa [#allocation3], 0
    %15 = vsyncpa [#allocation5], 0
    %16 = vsyncpa [#allocation8], 0
    // Predicated region
    $region2: #{tpu_custom_call.1} parent=1 // pred_check
      _
    $region3: #{tpu_custom_call.1} parent=1 // pred_check_branch
      %18 = sbr.rel (0) target = $region5
    $region4: #{tpu_custom_call.1} parent=1 // pred_region
      %s20 = ssub.s32 128, 128
      %21 = vsyncadd [#allocation3], %s20
      %s23 = sshll.u32 [#allocation2], 4
      %s24 = int_to_ptr.vmem [resolvable:$true] %s23
      %26 = dma.hbm_to_vmem [thread:$0]  %s0, 128, %s24, [#allocation3]
    $region5: #{tpu_custom_call.1} parent=1 // pred_fallthru
      _
    // Predicated region
    $region6: #{tpu_custom_call.1} parent=1 // pred_check
      _
    $region7: #{tpu_custom_call.1} parent=1 // pred_check_branch
      %28 = sbr.rel (0) target = $region9
    $region8: #{tpu_custom_call.1} parent=1 // pred_region
      %s30 = ssub.s32 128, 128
      %31 = vsyncadd [#allocation5], %s30
      %s32 = sshll.u32 [#allocation4], 4
      %s33 = int_to_ptr.vmem [resolvable:$true] %s32
      %38 = dma.hbm_to_vmem [thread:$0]  %s1, 128, %s33, [#allocation5], 64, 64, 4
    $region9: #{tpu_custom_call.1} parent=1 // pred_fallthru
      _
    // Predicated region
    $region10: #{tpu_custom_call.1} parent=1 // pred_check
      _
    $region11: #{tpu_custom_call.1} parent=1 // pred_check_branch
      %40 = sbr.rel (0) target = $region13
    $region12: #{tpu_custom_call.1} parent=1 // pred_region
      _
    $region13: #{tpu_custom_call.1} parent=1 // pred_fallthru
      _
    // Predicated region
    $region14: #{tpu_custom_call.1} parent=1 // pred_check
      _
    $region15: #{tpu_custom_call.1} parent=1 // pred_check_branch
      %42 = sbr.rel (0) target = $region17
    $region16: #{tpu_custom_call.1} parent=1 // pred_region
      %s44 = ssub.s32 1024, 1024
      %45 = vsyncadd [#allocation5], %s44
      %s46 = sshll.u32 [#allocation6], 4
      %s47 = int_to_ptr.vmem [resolvable:$true] %s46
      %52 = dma.hbm_to_vmem [thread:$0]  %s3, 1024, %s47, [#allocation5], 64, 64, 4
    $region17: #{tpu_custom_call.1} parent=1 // pred_fallthru
      _
    // Predicated region
    $region18: #{tpu_custom_call.1} parent=1 // pred_check
      _
    $region19: #{tpu_custom_call.1} parent=1 // pred_check_branch
      %54 = sbr.rel (0) target = $region21
    $region20: #{tpu_custom_call.1} parent=1 // pred_region
      _
    $region21: #{tpu_custom_call.1} parent=1 // pred_fallthru
      _
    // Predicated region
    $region22: #{tpu_custom_call.1} parent=1 // pred_check
      _
    $region23: #{tpu_custom_call.1} parent=1 // pred_check_branch
      %56 = sbr.rel (0) target = $region25
    $region24: #{tpu_custom_call.1} parent=1 // pred_region
      %s58 = ssub.s32 1024, 1024
      %59 = vsyncadd [#allocation8], %s58
      %s60 = sshll.u32 [#allocation7], 4
      %s61 = int_to_ptr.vmem [resolvable:$true] %s60
      %66 = dma.hbm_to_vmem [thread:$0]  %s5, 1024, %s61, [#allocation8], 64, 64, 4
    $region25: #{tpu_custom_call.1} parent=1 // pred_fallthru
      _
    // Predicated region
    $region26: #{tpu_custom_call.1} parent=1 // pred_check
      _
    $region27: #{tpu_custom_call.1} parent=1 // pred_check_branch
      %68 = sbr.rel (0) target = $region29
    $region28: #{tpu_custom_call.1} parent=1 // pred_region
      _
    $region29: #{tpu_custom_call.1} parent=1 // pred_fallthru
      _
    // Predicated region
    $region30: #{tpu_custom_call.1} parent=1 // pred_check
      _
    $region31: #{tpu_custom_call.1} parent=1 // pred_check_branch
      %70 = sbr.rel (0) target = $region33
    $region32: #{tpu_custom_call.1} parent=1 // pred_region
      %s72 = ssub.s32 1024, 1024
      %73 = vsyncadd [#allocation8], %s72
      %s74 = sshll.u32 [#allocation9], 4
      %s75 = int_to_ptr.vmem [resolvable:$true] %s74
      %80 = dma.hbm_to_vmem [thread:$0]  %s7, 1024, %s75, [#allocation8], 64, 64, 4
    $region33: #{tpu_custom_call.1} parent=1 // pred_fallthru
      _
    // Predicated region
    $region34: #{tpu_custom_call.1} parent=1 // pred_check
      _
    $region35: #{tpu_custom_call.1} parent=1 // pred_check_branch
      %82 = sbr.rel (0) target = $region37
    $region36: #{tpu_custom_call.1} parent=1 // pred_region
      _
    $region37: #{tpu_custom_call.1} parent=1 // pred_fallthru
      _
    // Predicated region
    $region38: #{tpu_custom_call.1} parent=1 // pred_check
      _
    $region39: #{tpu_custom_call.1} parent=1 // pred_check_branch
      %84 = sbr.rel (0) target = $region41
    $region40: #{tpu_custom_call.1} parent=1 // pred_region
      %85 = dma.done [#allocation3], 128
    $region41: #{tpu_custom_call.1} parent=1 // pred_fallthru
      _
    // Predicated region
    $region42: #{tpu_custom_call.1} parent=1 // pred_check
      _
    $region43: #{tpu_custom_call.1} parent=1 // pred_check_branch
      %87 = sbr.rel (0) target = $region45
    $region44: #{tpu_custom_call.1} parent=1 // pred_region
      %88 = dma.done [#allocation5], 128
    $region45: #{tpu_custom_call.1} parent=1 // pred_fallthru
      _
    // Predicated region
    $region46: #{tpu_custom_call.1} parent=1 // pred_check
      _
    $region47: #{tpu_custom_call.1} parent=1 // pred_check_branch
      %90 = sbr.rel (0) target = $region49
    $region48: #{tpu_custom_call.1} parent=1 // pred_region
      %91 = dma.done [#allocation5], 1024
    $region49: #{tpu_custom_call.1} parent=1 // pred_fallthru
      _
    // Predicated region
    $region50: #{tpu_custom_call.1} parent=1 // pred_check
      _
    $region51: #{tpu_custom_call.1} parent=1 // pred_check_branch
      %93 = sbr.rel (0) target = $region53
    $region52: #{tpu_custom_call.1} parent=1 // pred_region
      %94 = dma.done [#allocation8], 1024
    $region53: #{tpu_custom_call.1} parent=1 // pred_fallthru
      _
    // Predicated region
    $region54: #{tpu_custom_call.1} parent=1 // pred_check
      _
    $region55: #{tpu_custom_call.1} parent=1 // pred_check_branch
      %96 = sbr.rel (0) target = $region57
    $region56: #{tpu_custom_call.1} parent=1 // pred_region
      %97 = dma.done [#allocation8], 1024
    $region57: #{tpu_custom_call.1} parent=1 // pred_fallthru
      _
    %v99 = vld [vmem:[%s2] sm:$0x1]
    %v100 = vld [vmem:[%s4] sm:$0x1]
    %v101 = vld [vmem:[%s6] sm:$0x1]
    %v102 = vld [vmem:[%s8] sm:$0x1]
    %v103 = vld [vmem:[#allocation2] sm:$0xff]
    %v104 = vpack.c.bf16 %v103, %v103
    %v105 = vld [vmem:[#allocation4] sm:$0xf]
    %v106 = vld [vmem:[#allocation4 + $0x4] sm:$0xf]
    %v108 = vlaneseq
    %v109 = vshrl.u32 %v108, 7
    %v110 = vsub.s32 0, %v109
    %v111 = vrot.slane %v99, %v110
    %v115 = vunpack.c.l.b16 %v105
    %v116 = vunpack.c.l.b16 %v106
    %v117 = vpack.c.b16 %v116, %v115
    %vm119 = vcmask 130048
    %v121 = vsel %vm119, %v104, 0
    %123 = vmatprep.subr.bf16.mxu0 0
    %124 = vmatpush1.bf16.msra.mxu0 %v117
    %125 = vmatprep.subr.bf16.mxu0 0
    %126 = vmatpush1.bf16.msra.mxu0 0
    %127 = vmatprep.subr.bf16.mxu0 0
    %128 = vmatpush1.bf16.msra.mxu0 0
    %129 = vmatprep.subr.bf16.mxu0 0
    %130 = vmatpush1.bf16.msra.mxu0 0
    %131 = vmatprep.subr.bf16.mxu0 0
    %132 = vmatpush1.bf16.msra.mxu0 0
    %133 = vmatprep.subr.bf16.mxu0 0
    %134 = vmatpush1.bf16.msra.mxu0 0
    %135 = vmatprep.subr.bf16.mxu0 0
    %136 = vmatpush1.bf16.msra.mxu0 0
    %137 = vmatprep.subr.bf16.mxu0 0
    %138 = vmatpush1.bf16.msra.mxu0 0
    %139 = vmatprep.subr.bf16.mxu0 0
    %140 = vmatpush1.bf16.msra.mxu0 0
    %141 = vmatprep.subr.bf16.mxu0 0
    %142 = vmatpush1.bf16.msra.mxu0 0
    %143 = vmatprep.subr.bf16.mxu0 0
    %144 = vmatpush1.bf16.msra.mxu0 0
    %145 = vmatprep.subr.bf16.mxu0 0
    %146 = vmatpush1.bf16.msra.mxu0 0
    %147 = vmatprep.subr.bf16.mxu0 0
    %148 = vmatpush1.bf16.msra.mxu0 0
    %149 = vmatprep.subr.bf16.mxu0 0
    %150 = vmatpush1.bf16.msra.mxu0 0
    %151 = vmatprep.subr.bf16.mxu0 0
    %152 = vmatpush1.bf16.msra.mxu0 0
    %153 = vmatprep.subr.bf16.mxu0 0
    %154 = vmatpush1.bf16.msra.mxu0 0
    %155 = vmatprep.mubr.bf16.mxu0 0
    %156 = vmatmul.mubr.bf16.gmra.mrb[0].mxu0 %v121
    %v157 = vpop.f32.mrb[0].mxu0
    %v158 = vadd.f32 %v111, %v157
    %v159 = vpop.f32.mrb[0].mxu0
    %v160 = vpop.f32.mrb[0].mxu0
    %v161 = vpop.f32.mrb[0].mxu0
    %162 = vdwg.mxu0
    %v163 = vmax.f32 %v158, 0.0
    %v164 = vpack.c.bf16 %v163, %v163
    %v165 = vld [vmem:[#allocation6] sm:$0xf]
    %v166 = vld [vmem:[#allocation6 + $0x4] sm:$0xf]
    %v167 = vld [vmem:[#allocation6 + $0x8] sm:$0xf]
    %v168 = vld [vmem:[#allocation6 + $0xc] sm:$0xf]
    %v169 = vld [vmem:[#allocation6 + $0x10] sm:$0xf]
    %v170 = vld [vmem:[#allocation6 + $0x14] sm:$0xf]
    %v171 = vld [vmem:[#allocation6 + $0x18] sm:$0xf]
    %v172 = vld [vmem:[#allocation6 + $0x1c] sm:$0xf]
    %v173 = vld [vmem:[#allocation6 + $0x20] sm:$0xf]
    %v174 = vld [vmem:[#allocation6 + $0x24] sm:$0xf]
    %v175 = vld [vmem:[#allocation6 + $0x28] sm:$0xf]
    %v176 = vld [vmem:[#allocation6 + $0x2c] sm:$0xf]
    %v177 = vld [vmem:[#allocation6 + $0x30] sm:$0xf]
    %v178 = vld [vmem:[#allocation6 + $0x34] sm:$0xf]
    %v179 = vld [vmem:[#allocation6 + $0x38] sm:$0xf]
    %v180 = vld [vmem:[#allocation6 + $0x3c] sm:$0xf]
    %v182 = vlaneseq
    %v183 = vshrl.u32 %v182, 7
    %v184 = vsub.s32 0, %v183
    %v185 = vrot.slane %v100, %v184
    %v203 = vunpack.c.l.b16 %v165
    %v204 = vunpack.c.l.b16 %v166
    %v205 = vunpack.c.l.b16 %v167
    %v206 = vunpack.c.l.b16 %v168
    %v207 = vunpack.c.l.b16 %v169
    %v208 = vunpack.c.l.b16 %v170
    %v209 = vunpack.c.l.b16 %v171
    %v210 = vunpack.c.l.b16 %v172
    %v211 = vunpack.c.l.b16 %v173
    %v212 = vunpack.c.l.b16 %v174
    %v213 = vunpack.c.l.b16 %v175
    %v214 = vunpack.c.l.b16 %v176
    %v215 = vunpack.c.l.b16 %v177
    %v216 = vunpack.c.l.b16 %v178
    %v217 = vunpack.c.l.b16 %v179
    %v218 = vunpack.c.l.b16 %v180
    %v219 = vpack.c.b16 %v204, %v203
    %v220 = vpack.c.b16 %v206, %v205
    %v221 = vpack.c.b16 %v208, %v207
    %v222 = vpack.c.b16 %v210, %v209
    %v223 = vpack.c.b16 %v212, %v211
    %v224 = vpack.c.b16 %v214, %v213
    %v225 = vpack.c.b16 %v216, %v215
    %v226 = vpack.c.b16 %v218, %v217
    %235 = vmatprep.subr.bf16.mxu0 0
    %236 = vmatpush1.bf16.msra.mxu0 %v219
    %237 = vmatprep.subr.bf16.mxu0 0
    %238 = vmatpush1.bf16.msra.mxu0 %v220
    %239 = vmatprep.subr.bf16.mxu0 0
    %240 = vmatpush1.bf16.msra.mxu0 %v221
    %241 = vmatprep.subr.bf16.mxu0 0
    %242 = vmatpush1.bf16.msra.mxu0 %v222
    %243 = vmatprep.subr.bf16.mxu0 0
    %244 = vmatpush1.bf16.msra.mxu0 %v223
    %245 = vmatprep.subr.bf16.mxu0 0
    %246 = vmatpush1.bf16.msra.mxu0 %v224
    %247 = vmatprep.subr.bf16.mxu0 0
    %248 = vmatpush1.bf16.msra.mxu0 %v225
    %249 = vmatprep.subr.bf16.mxu0 0
    %250 = vmatpush1.bf16.msra.mxu0 %v226
    %251 = vmatprep.subr.bf16.mxu0 0
    %252 = vmatpush1.bf16.msra.mxu0 0
    %253 = vmatprep.subr.bf16.mxu0 0
    %254 = vmatpush1.bf16.msra.mxu0 0
    %255 = vmatprep.subr.bf16.mxu0 0
    %256 = vmatpush1.bf16.msra.mxu0 0
    %257 = vmatprep.subr.bf16.mxu0 0
    %258 = vmatpush1.bf16.msra.mxu0 0
    %259 = vmatprep.subr.bf16.mxu0 0
    %260 = vmatpush1.bf16.msra.mxu0 0
    %261 = vmatprep.subr.bf16.mxu0 0
    %262 = vmatpush1.bf16.msra.mxu0 0
    %263 = vmatprep.subr.bf16.mxu0 0
    %264 = vmatpush1.bf16.msra.mxu0 0
    %265 = vmatprep.subr.bf16.mxu0 0
    %266 = vmatpush1.bf16.msra.mxu0 0
    %267 = vmatprep.mubr.bf16.mxu0 0
    %268 = vmatmul.mubr.bf16.gmra.mrb[0].mxu0 %v164
    %v269 = vpop.f32.mrb[0].mxu0
    %v270 = vadd.f32 %v185, %v269
    %v271 = vpop.f32.mrb[0].mxu0
    %v272 = vpop.f32.mrb[0].mxu0
    %v273 = vpop.f32.mrb[0].mxu0
    %274 = vdwg.mxu0
    %v275 = vmax.f32 %v270, 0.0
    %v276 = vpack.c.bf16 %v275, %v275
    %v277 = vld [vmem:[#allocation7] sm:$0xf]
    %v278 = vld [vmem:[#allocation7 + $0x4] sm:$0xf]
    %v279 = vld [vmem:[#allocation7 + $0x8] sm:$0xf]
    %v280 = vld [vmem:[#allocation7 + $0xc] sm:$0xf]
    %v281 = vld [vmem:[#allocation7 + $0x10] sm:$0xf]
    %v282 = vld [vmem:[#allocation7 + $0x14] sm:$0xf]
    %v283 = vld [vmem:[#allocation7 + $0x18] sm:$0xf]
    %v284 = vld [vmem:[#allocation7 + $0x1c] sm:$0xf]
    %v285 = vld [vmem:[#allocation7 + $0x20] sm:$0xf]
    %v286 = vld [vmem:[#allocation7 + $0x24] sm:$0xf]
    %v287 = vld [vmem:[#allocation7 + $0x28] sm:$0xf]
    %v288 = vld [vmem:[#allocation7 + $0x2c] sm:$0xf]
    %v289 = vld [vmem:[#allocation7 + $0x30] sm:$0xf]
    %v290 = vld [vmem:[#allocation7 + $0x34] sm:$0xf]
    %v291 = vld [vmem:[#allocation7 + $0x38] sm:$0xf]
    %v292 = vld [vmem:[#allocation7 + $0x3c] sm:$0xf]
    %v294 = vlaneseq
    %v295 = vshrl.u32 %v294, 7
    %v296 = vsub.s32 0, %v295
    %v297 = vrot.slane %v101, %v296
    %v315 = vunpack.c.l.b16 %v277
    %v316 = vunpack.c.l.b16 %v278
    %v317 = vunpack.c.l.b16 %v279
    %v318 = vunpack.c.l.b16 %v280
    %v319 = vunpack.c.l.b16 %v281
    %v320 = vunpack.c.l.b16 %v282
    %v321 = vunpack.c.l.b16 %v283
    %v322 = vunpack.c.l.b16 %v284
    %v323 = vunpack.c.l.b16 %v285
    %v324 = vunpack.c.l.b16 %v286
    %v325 = vunpack.c.l.b16 %v287
    %v326 = vunpack.c.l.b16 %v288
    %v327 = vunpack.c.l.b16 %v289
    %v328 = vunpack.c.l.b16 %v290
    %v329 = vunpack.c.l.b16 %v291
    %v330 = vunpack.c.l.b16 %v292
    %v331 = vpack.c.b16 %v316, %v315
    %v332 = vpack.c.b16 %v318, %v317
    %v333 = vpack.c.b16 %v320, %v319
    %v334 = vpack.c.b16 %v322, %v321
    %v335 = vpack.c.b16 %v324, %v323
    %v336 = vpack.c.b16 %v326, %v325
    %v337 = vpack.c.b16 %v328, %v327
    %v338 = vpack.c.b16 %v330, %v329
    %347 = vmatprep.subr.bf16.mxu0 0
    %348 = vmatpush1.bf16.msra.mxu0 %v331
    %349 = vmatprep.subr.bf16.mxu0 0
    %350 = vmatpush1.bf16.msra.mxu0 %v332
    %351 = vmatprep.subr.bf16.mxu0 0
    %352 = vmatpush1.bf16.msra.mxu0 %v333
    %353 = vmatprep.subr.bf16.mxu0 0
    %354 = vmatpush1.bf16.msra.mxu0 %v334
    %355 = vmatprep.subr.bf16.mxu0 0
    %356 = vmatpush1.bf16.msra.mxu0 %v335
    %357 = vmatprep.subr.bf16.mxu0 0
    %358 = vmatpush1.bf16.msra.mxu0 %v336
    %359 = vmatprep.subr.bf16.mxu0 0
    %360 = vmatpush1.bf16.msra.mxu0 %v337
    %361 = vmatprep.subr.bf16.mxu0 0
    %362 = vmatpush1.bf16.msra.mxu0 %v338
    %363 = vmatprep.subr.bf16.mxu0 0
    %364 = vmatpush1.bf16.msra.mxu0 0
    %365 = vmatprep.subr.bf16.mxu0 0
    %366 = vmatpush1.bf16.msra.mxu0 0
    %367 = vmatprep.subr.bf16.mxu0 0
    %368 = vmatpush1.bf16.msra.mxu0 0
    %369 = vmatprep.subr.bf16.mxu0 0
    %370 = vmatpush1.bf16.msra.mxu0 0
    %371 = vmatprep.subr.bf16.mxu0 0
    %372 = vmatpush1.bf16.msra.mxu0 0
    %373 = vmatprep.subr.bf16.mxu0 0
    %374 = vmatpush1.bf16.msra.mxu0 0
    %375 = vmatprep.subr.bf16.mxu0 0
    %376 = vmatpush1.bf16.msra.mxu0 0
    %377 = vmatprep.subr.bf16.mxu0 0
    %378 = vmatpush1.bf16.msra.mxu0 0
    %379 = vmatprep.mubr.bf16.mxu0 0
    %380 = vmatmul.mubr.bf16.gmra.mrb[0].mxu0 %v276
    %v381 = vpop.f32.mrb[0].mxu0
    %v382 = vadd.f32 %v297, %v381
    %v383 = vpop.f32.mrb[0].mxu0
    %v384 = vpop.f32.mrb[0].mxu0
    %v385 = vpop.f32.mrb[0].mxu0
    %386 = vdwg.mxu0
    %v387 = vmax.f32 %v382, 0.0
    %v388 = vpack.c.bf16 %v387, %v387
    %v389 = vld [vmem:[#allocation9] sm:$0xf]
    %v390 = vld [vmem:[#allocation9 + $0x4] sm:$0xf]
    %v391 = vld [vmem:[#allocation9 + $0x8] sm:$0xf]
    %v392 = vld [vmem:[#allocation9 + $0xc] sm:$0xf]
    %v393 = vld [vmem:[#allocation9 + $0x10] sm:$0xf]
    %v394 = vld [vmem:[#allocation9 + $0x14] sm:$0xf]
    %v395 = vld [vmem:[#allocation9 + $0x18] sm:$0xf]
    %v396 = vld [vmem:[#allocation9 + $0x1c] sm:$0xf]
    %v397 = vld [vmem:[#allocation9 + $0x20] sm:$0xf]
    %v398 = vld [vmem:[#allocation9 + $0x24] sm:$0xf]
    %v399 = vld [vmem:[#allocation9 + $0x28] sm:$0xf]
    %v400 = vld [vmem:[#allocation9 + $0x2c] sm:$0xf]
    %v401 = vld [vmem:[#allocation9 + $0x30] sm:$0xf]
    %v402 = vld [vmem:[#allocation9 + $0x34] sm:$0xf]
    %v403 = vld [vmem:[#allocation9 + $0x38] sm:$0xf]
    %v404 = vld [vmem:[#allocation9 + $0x3c] sm:$0xf]
    %v406 = vlaneseq
    %v407 = vshrl.u32 %v406, 7
    %v408 = vsub.s32 0, %v407
    %v409 = vrot.slane %v102, %v408
    %v427 = vunpack.c.l.b16 %v389
    %v428 = vunpack.c.l.b16 %v390
    %v429 = vunpack.c.l.b16 %v391
    %v430 = vunpack.c.l.b16 %v392
    %v431 = vunpack.c.l.b16 %v393
    %v432 = vunpack.c.l.b16 %v394
    %v433 = vunpack.c.l.b16 %v395
    %v434 = vunpack.c.l.b16 %v396
    %v435 = vunpack.c.l.b16 %v397
    %v436 = vunpack.c.l.b16 %v398
    %v437 = vunpack.c.l.b16 %v399
    %v438 = vunpack.c.l.b16 %v400
    %v439 = vunpack.c.l.b16 %v401
    %v440 = vunpack.c.l.b16 %v402
    %v441 = vunpack.c.l.b16 %v403
    %v442 = vunpack.c.l.b16 %v404
    %v443 = vpack.c.b16 %v428, %v427
    %v444 = vpack.c.b16 %v430, %v429
    %v445 = vpack.c.b16 %v432, %v431
    %v446 = vpack.c.b16 %v434, %v433
    %v447 = vpack.c.b16 %v436, %v435
    %v448 = vpack.c.b16 %v438, %v437
    %v449 = vpack.c.b16 %v440, %v439
    %v450 = vpack.c.b16 %v442, %v441
    %459 = vmatprep.subr.bf16.mxu0 0
    %460 = vmatpush1.bf16.msra.mxu0 %v443
    %461 = vmatprep.subr.bf16.mxu0 0
    %462 = vmatpush1.bf16.msra.mxu0 %v444
    %463 = vmatprep.subr.bf16.mxu0 0
    %464 = vmatpush1.bf16.msra.mxu0 %v445
    %465 = vmatprep.subr.bf16.mxu0 0
    %466 = vmatpush1.bf16.msra.mxu0 %v446
    %467 = vmatprep.subr.bf16.mxu0 0
    %468 = vmatpush1.bf16.msra.mxu0 %v447
    %469 = vmatprep.subr.bf16.mxu0 0
    %470 = vmatpush1.bf16.msra.mxu0 %v448
    %471 = vmatprep.subr.bf16.mxu0 0
    %472 = vmatpush1.bf16.msra.mxu0 %v449
    %473 = vmatprep.subr.bf16.mxu0 0
    %474 = vmatpush1.bf16.msra.mxu0 %v450
    %475 = vmatprep.subr.bf16.mxu0 0
    %476 = vmatpush1.bf16.msra.mxu0 0
    %477 = vmatprep.subr.bf16.mxu0 0
    %478 = vmatpush1.bf16.msra.mxu0 0
    %479 = vmatprep.subr.bf16.mxu0 0
    %480 = vmatpush1.bf16.msra.mxu0 0
    %481 = vmatprep.subr.bf16.mxu0 0
    %482 = vmatpush1.bf16.msra.mxu0 0
    %483 = vmatprep.subr.bf16.mxu0 0
    %484 = vmatpush1.bf16.msra.mxu0 0
    %485 = vmatprep.subr.bf16.mxu0 0
    %486 = vmatpush1.bf16.msra.mxu0 0
    %487 = vmatprep.subr.bf16.mxu0 0
    %488 = vmatpush1.bf16.msra.mxu0 0
    %489 = vmatprep.subr.bf16.mxu0 0
    %490 = vmatpush1.bf16.msra.mxu0 0
    %491 = vmatprep.mubr.bf16.mxu0 0
    %492 = vmatmul.mubr.bf16.gmra.mrb[0].mxu0 %v388
    %v493 = vpop.f32.mrb[0].mxu0
    %v494 = vadd.f32 %v409, %v493
    %v495 = vpop.f32.mrb[0].mxu0
    %v496 = vpop.f32.mrb[0].mxu0
    %v497 = vpop.f32.mrb[0].mxu0
    %498 = vdwg.mxu0
    %v499 = vsub.f32 0.0, %v494
    %v500 = vmul.f32 %v499, 1.442695
    %v501 = vpow.pop %v500
    %v502 = vadd.f32 %v501, 1.0
    %v503 = vrcp.pop %v502
    %vm504 = vcmask 7168
    %505 = vst.msk [vmem:[%s9] sm:$0xff] %vm504, %v503
    // Predicated region
    $region58: #{tpu_custom_call.1} parent=1 // pred_check
      _
    $region59: #{tpu_custom_call.1} parent=1 // pred_check_branch
      %507 = sbr.rel (0) target = $region61
    $region60: #{tpu_custom_call.1} parent=1 // pred_region
      _
    $region61: #{tpu_custom_call.1} parent=1 // pred_fallthru
      _
    // Predicated region
    $region62: #{tpu_custom_call.1} parent=1 // pred_check
      _
    $region63: #{tpu_custom_call.1} parent=1 // pred_check_branch
      %509 = sbr.rel (0) target = $region65
    $region64: #{tpu_custom_call.1} parent=1 // pred_region
      _
    $region65: #{tpu_custom_call.1} parent=1 // pred_fallthru
      _
    %510 = vsyncpa [#allocation3], 1
    %511 = vsyncpa [#allocation5], 1
    %512 = vsyncpa [#allocation8], 1

// kernel: tpu_custom_call.1
$region0: #{tpu_custom_call.1}
  #allocation0 [shape = 'u32[]', space=smem, size = 0x4, offset = 0x4, fixed_abs, tag = 'smem constant byte address 0x4 - core index']
  #allocation1 [shape = 'u32[144,128]{1,0:T(1,128)}', space=vmem, size = 0x12000, scoped, tag = 'internal scratch']
  %s0 = inlined_call_operand.hbm [shape: f32[8,16], index: 0, kind: input, shape index: {}]
  %s1 = inlined_call_operand.hbm [shape: bf16[16,128], index: 1, kind: input, shape index: {}]
  %s2 = inlined_call_operand.vmem [shape: f32[1,128], index: 2, kind: input, shape index: {}]
  %s3 = inlined_call_operand.hbm [shape: bf16[128,128], index: 3, kind: input, shape index: {}]
  %s4 = inlined_call_operand.vmem [shape: f32[1,128], index: 4, kind: input, shape index: {}]
  %s5 = inlined_call_operand.hbm [shape: bf16[128,128], index: 5, kind: input, shape index: {}]
  %s6 = inlined_call_operand.vmem [shape: f32[1,128], index: 6, kind: input, shape index: {}]
  %s7 = inlined_call_operand.hbm [shape: bf16[128,128], index: 7, kind: input, shape index: {}]
  %s8 = inlined_call_operand.vmem [shape: f32[1,128], index: 8, kind: input, shape index: {}]
  %s9 = inlined_call_operand.vmem [shape: f32[8,1], index: 9, kind: output, shape index: {}]
  %s10 = sld [smem:[#allocation0]]
  $region66: #{tpu_custom_call.1} parent=0
    _
  %s12 = ssub.s32 1, %s10
  %s13 = scalar_select 0, %s12, %s10
  $region1: #{tpu_custom_call.1} parent=0
    #allocation2 [shape = 'u8[4096]{0}', space=vmem, size = 0x1000, scoped, tag = 'input window, operand 0, single buffered']
    #allocation3 [shape = 's32[1]{0}', space=sflag, size = 0x4, scoped, tag = 'scoped memory for tpu_custom_call.1']
    #allocation4 [shape = 'u8[4096]{0}', space=vmem, size = 0x1000, scoped, tag = 'input window, operand 1, single buffered']
    #allocation5 [shape = 's32[1]{0}', space=sflag, size = 0x4, scoped, tag = 'scoped memory for tpu_custom_call.1']
    #allocation6 [shape = 'u8[32768]{0}', space=vmem, size = 0x8000, scoped, tag = 'input window, operand 3, single buffered']
    #allocation7 [shape = 'u8[32768]{0}', space=vmem, size = 0x8000, scoped, tag = 'input window, operand 5, single buffered']
    #allocation8 [shape = 's32[1]{0}', space=sflag, size = 0x4, scoped, tag = 'scoped memory for tpu_custom_call.1']
    #allocation9 [shape = 'u8[32768]{0}', space=vmem, size = 0x8000, scoped, tag = 'input window, operand 7, single buffered']
    %14 = vsyncpa [#allocation3], 0
    %15 = vsyncpa [#allocation5], 0
    %16 = vsyncpa [#allocation8], 0
    // Predicated region
    $region2: #{tpu_custom_call.1} parent=1 // pred_check
      _
    $region3: #{tpu_custom_call.1} parent=1 // pred_check_branch
      %18 = sbr.rel (0) target = $region5
    $region4: #{tpu_custom_call.1} parent=1 // pred_region
      %s20 = ssub.s32 128, 128
      %21 = vsyncadd [#allocation3], %s20
      %s23 = sshll.u32 [#allocation2], 4
      %s24 = int_to_ptr.vmem [resolvable:$true] %s23
      %26 = dma.hbm_to_vmem [thread:$0]  %s0, 128, %s24, [#allocation3]
    $region5: #{tpu_custom_call.1} parent=1 // pred_fallthru
      _
    // Predicated region
    $region6: #{tpu_custom_call.1} parent=1 // pred_check
      _
    $region7: #{tpu_custom_call.1} parent=1 // pred_check_branch
      %28 = sbr.rel (0) target = $region9
    $region8: #{tpu_custom_call.1} parent=1 // pred_region
      %s30 = ssub.s32 128, 128
      %31 = vsyncadd [#allocation5], %s30
      %s32 = sshll.u32 [#allocation4], 4
      %s33 = int_to_ptr.vmem [resolvable:$true] %s32
      %38 = dma.hbm_to_vmem [thread:$0]  %s1, 128, %s33, [#allocation5], 64, 64, 4
    $region9: #{tpu_custom_call.1} parent=1 // pred_fallthru
      _
    // Predicated region
    $region10: #{tpu_custom_call.1} parent=1 // pred_check
      _
    $region11: #{tpu_custom_call.1} parent=1 // pred_check_branch
      %40 = sbr.rel (0) target = $region13
    $region12: #{tpu_custom_call.1} parent=1 // pred_region
      _
    $region13: #{tpu_custom_call.1} parent=1 // pred_fallthru
      _
    // Predicated region
    $region14: #{tpu_custom_call.1} parent=1 // pred_check
      _
    $region15: #{tpu_custom_call.1} parent=1 // pred_check_branch
      %42 = sbr.rel (0) target = $region17
    $region16: #{tpu_custom_call.1} parent=1 // pred_region
      %s44 = ssub.s32 1024, 1024
      %45 = vsyncadd [#allocation5], %s44
      %s46 = sshll.u32 [#allocation6], 4
      %s47 = int_to_ptr.vmem [resolvable:$true] %s46
      %52 = dma.hbm_to_vmem [thread:$0]  %s3, 1024, %s47, [#allocation5], 64, 64, 4
    $region17: #{tpu_custom_call.1} parent=1 // pred_fallthru
      _
    // Predicated region
    $region18: #{tpu_custom_call.1} parent=1 // pred_check
      _
    $region19: #{tpu_custom_call.1} parent=1 // pred_check_branch
      %54 = sbr.rel (0) target = $region21
    $region20: #{tpu_custom_call.1} parent=1 // pred_region
      _
    $region21: #{tpu_custom_call.1} parent=1 // pred_fallthru
      _
    // Predicated region
    $region22: #{tpu_custom_call.1} parent=1 // pred_check
      _
    $region23: #{tpu_custom_call.1} parent=1 // pred_check_branch
      %56 = sbr.rel (0) target = $region25
    $region24: #{tpu_custom_call.1} parent=1 // pred_region
      %s58 = ssub.s32 1024, 1024
      %59 = vsyncadd [#allocation8], %s58
      %s60 = sshll.u32 [#allocation7], 4
      %s61 = int_to_ptr.vmem [resolvable:$true] %s60
      %66 = dma.hbm_to_vmem [thread:$0]  %s5, 1024, %s61, [#allocation8], 64, 64, 4
    $region25: #{tpu_custom_call.1} parent=1 // pred_fallthru
      _
    // Predicated region
    $region26: #{tpu_custom_call.1} parent=1 // pred_check
      _
    $region27: #{tpu_custom_call.1} parent=1 // pred_check_branch
      %68 = sbr.rel (0) target = $region29
    $region28: #{tpu_custom_call.1} parent=1 // pred_region
      _
    $region29: #{tpu_custom_call.1} parent=1 // pred_fallthru
      _
    // Predicated region
    $region30: #{tpu_custom_call.1} parent=1 // pred_check
      _
    $region31: #{tpu_custom_call.1} parent=1 // pred_check_branch
      %70 = sbr.rel (0) target = $region33
    $region32: #{tpu_custom_call.1} parent=1 // pred_region
      %s72 = ssub.s32 1024, 1024
      %73 = vsyncadd [#allocation8], %s72
      %s74 = sshll.u32 [#allocation9], 4
      %s75 = int_to_ptr.vmem [resolvable:$true] %s74
      %80 = dma.hbm_to_vmem [thread:$0]  %s7, 1024, %s75, [#allocation8], 64, 64, 4
    $region33: #{tpu_custom_call.1} parent=1 // pred_fallthru
      _
    // Predicated region
    $region34: #{tpu_custom_call.1} parent=1 // pred_check
      _
    $region35: #{tpu_custom_call.1} parent=1 // pred_check_branch
      %82 = sbr.rel (0) target = $region37
    $region36: #{tpu_custom_call.1} parent=1 // pred_region
      _
    $region37: #{tpu_custom_call.1} parent=1 // pred_fallthru
      _
    // Predicated region
    $region38: #{tpu_custom_call.1} parent=1 // pred_check
      _
    $region39: #{tpu_custom_call.1} parent=1 // pred_check_branch
      %84 = sbr.rel (0) target = $region41
    $region40: #{tpu_custom_call.1} parent=1 // pred_region
      %85 = dma.done [#allocation3], 128
    $region41: #{tpu_custom_call.1} parent=1 // pred_fallthru
      _
    // Predicated region
    $region42: #{tpu_custom_call.1} parent=1 // pred_check
      _
    $region43: #{tpu_custom_call.1} parent=1 // pred_check_branch
      %87 = sbr.rel (0) target = $region45
    $region44: #{tpu_custom_call.1} parent=1 // pred_region
      %88 = dma.done [#allocation5], 128
    $region45: #{tpu_custom_call.1} parent=1 // pred_fallthru
      _
    // Predicated region
    $region46: #{tpu_custom_call.1} parent=1 // pred_check
      _
    $region47: #{tpu_custom_call.1} parent=1 // pred_check_branch
      %90 = sbr.rel (0) target = $region49
    $region48: #{tpu_custom_call.1} parent=1 // pred_region
      %91 = dma.done [#allocation5], 1024
    $region49: #{tpu_custom_call.1} parent=1 // pred_fallthru
      _
    // Predicated region
    $region50: #{tpu_custom_call.1} parent=1 // pred_check
      _
    $region51: #{tpu_custom_call.1} parent=1 // pred_check_branch
      %93 = sbr.rel (0) target = $region53
    $region52: #{tpu_custom_call.1} parent=1 // pred_region
      %94 = dma.done [#allocation8], 1024
    $region53: #{tpu_custom_call.1} parent=1 // pred_fallthru
      _
    // Predicated region
    $region54: #{tpu_custom_call.1} parent=1 // pred_check
      _
    $region55: #{tpu_custom_call.1} parent=1 // pred_check_branch
      %96 = sbr.rel (0) target = $region57
    $region56: #{tpu_custom_call.1} parent=1 // pred_region
      %97 = dma.done [#allocation8], 1024
    $region57: #{tpu_custom_call.1} parent=1 // pred_fallthru
      _
    %v99 = vld [vmem:[%s2] sm:$0x1]
    %v100 = vld [vmem:[%s4] sm:$0x1]
    %v101 = vld [vmem:[%s6] sm:$0x1]
    %v102 = vld [vmem:[%s8] sm:$0x1]
    %v103 = vld [vmem:[#allocation2] sm:$0xff]
    %v104 = vpack.c.bf16 %v103, %v103
    %v105 = vld [vmem:[#allocation4] sm:$0xf]
    %v106 = vld [vmem:[#allocation4 + $0x4] sm:$0xf]
    %v108 = vlaneseq
    %v109 = vshrl.u32 %v108, 7
    %v110 = vsub.s32 0, %v109
    %v111 = vrot.slane %v99, %v110
    %v115 = vunpack.c.l.b16 %v105
    %v116 = vunpack.c.l.b16 %v106
    %v117 = vpack.c.b16 %v116, %v115
    %vm119 = vcmask 130048
    %v121 = vsel %vm119, %v104, 0
    %123 = vmatprep.subr.bf16.mxu0 0
    %124 = vmatpush1.bf16.msra.mxu0 %v117
    %125 = vmatprep.subr.bf16.mxu0 0
    %126 = vmatpush1.bf16.msra.mxu0 0
    %127 = vmatprep.subr.bf16.mxu0 0
    %128 = vmatpush1.bf16.msra.mxu0 0
    %129 = vmatprep.subr.bf16.mxu0 0
    %130 = vmatpush1.bf16.msra.mxu0 0
    %131 = vmatprep.subr.bf16.mxu0 0
    %132 = vmatpush1.bf16.msra.mxu0 0
    %133 = vmatprep.subr.bf16.mxu0 0
    %134 = vmatpush1.bf16.msra.mxu0 0
    %135 = vmatprep.subr.bf16.mxu0 0
    %136 = vmatpush1.bf16.msra.mxu0 0
    %137 = vmatprep.subr.bf16.mxu0 0
    %138 = vmatpush1.bf16.msra.mxu0 0
    %139 = vmatprep.subr.bf16.mxu0 0
    %140 = vmatpush1.bf16.msra.mxu0 0
    %141 = vmatprep.subr.bf16.mxu0 0
    %142 = vmatpush1.bf16.msra.mxu0 0
    %143 = vmatprep.subr.bf16.mxu0 0
    %144 = vmatpush1.bf16.msra.mxu0 0
    %145 = vmatprep.subr.bf16.mxu0 0
    %146 = vmatpush1.bf16.msra.mxu0 0
    %147 = vmatprep.subr.bf16.mxu0 0
    %148 = vmatpush1.bf16.msra.mxu0 0
    %149 = vmatprep.subr.bf16.mxu0 0
    %150 = vmatpush1.bf16.msra.mxu0 0
    %151 = vmatprep.subr.bf16.mxu0 0
    %152 = vmatpush1.bf16.msra.mxu0 0
    %153 = vmatprep.subr.bf16.mxu0 0
    %154 = vmatpush1.bf16.msra.mxu0 0
    %155 = vmatprep.mubr.bf16.mxu0 0
    %156 = vmatmul.mubr.bf16.gmra.mrb[0].mxu0 %v121
    %v157 = vpop.f32.mrb[0].mxu0
    %v158 = vadd.f32 %v111, %v157
    %v159 = vpop.f32.mrb[0].mxu0
    %v160 = vpop.f32.mrb[0].mxu0
    %v161 = vpop.f32.mrb[0].mxu0
    %162 = vdwg.mxu0
    %v163 = vmax.f32 %v158, 0.0
    %v164 = vpack.c.bf16 %v163, %v163
    %v165 = vld [vmem:[#allocation6] sm:$0xf]
    %v166 = vld [vmem:[#allocation6 + $0x4] sm:$0xf]
    %v167 = vld [vmem:[#allocation6 + $0x8] sm:$0xf]
    %v168 = vld [vmem:[#allocation6 + $0xc] sm:$0xf]
    %v169 = vld [vmem:[#allocation6 + $0x10] sm:$0xf]
    %v170 = vld [vmem:[#allocation6 + $0x14] sm:$0xf]
    %v171 = vld [vmem:[#allocation6 + $0x18] sm:$0xf]
    %v172 = vld [vmem:[#allocation6 + $0x1c] sm:$0xf]
    %v173 = vld [vmem:[#allocation6 + $0x20] sm:$0xf]
    %v174 = vld [vmem:[#allocation6 + $0x24] sm:$0xf]
    %v175 = vld [vmem:[#allocation6 + $0x28] sm:$0xf]
    %v176 = vld [vmem:[#allocation6 + $0x2c] sm:$0xf]
    %v177 = vld [vmem:[#allocation6 + $0x30] sm:$0xf]
    %v178 = vld [vmem:[#allocation6 + $0x34] sm:$0xf]
    %v179 = vld [vmem:[#allocation6 + $0x38] sm:$0xf]
    %v180 = vld [vmem:[#allocation6 + $0x3c] sm:$0xf]
    %v182 = vlaneseq
    %v183 = vshrl.u32 %v182, 7
    %v184 = vsub.s32 0, %v183
    %v185 = vrot.slane %v100, %v184
    %v203 = vunpack.c.l.b16 %v165
    %v204 = vunpack.c.l.b16 %v166
    %v205 = vunpack.c.l.b16 %v167
    %v206 = vunpack.c.l.b16 %v168
    %v207 = vunpack.c.l.b16 %v169
    %v208 = vunpack.c.l.b16 %v170
    %v209 = vunpack.c.l.b16 %v171
    %v210 = vunpack.c.l.b16 %v172
    %v211 = vunpack.c.l.b16 %v173
    %v212 = vunpack.c.l.b16 %v174
    %v213 = vunpack.c.l.b16 %v175
    %v214 = vunpack.c.l.b16 %v176
    %v215 = vunpack.c.l.b16 %v177
    %v216 = vunpack.c.l.b16 %v178
    %v217 = vunpack.c.l.b16 %v179
    %v218 = vunpack.c.l.b16 %v180
    %v219 = vpack.c.b16 %v204, %v203
    %v220 = vpack.c.b16 %v206, %v205
    %v221 = vpack.c.b16 %v208, %v207
    %v222 = vpack.c.b16 %v210, %v209
    %v223 = vpack.c.b16 %v212, %v211
    %v224 = vpack.c.b16 %v214, %v213
    %v225 = vpack.c.b16 %v216, %v215
    %v226 = vpack.c.b16 %v218, %v217
    %235 = vmatprep.subr.bf16.mxu0 0
    %236 = vmatpush1.bf16.msra.mxu0 %v219
    %237 = vmatprep.subr.bf16.mxu0 0
    %238 = vmatpush1.bf16.msra.mxu0 %v220
    %239 = vmatprep.subr.bf16.mxu0 0
    %240 = vmatpush1.bf16.msra.mxu0 %v221
    %241 = vmatprep.subr.bf16.mxu0 0
    %242 = vmatpush1.bf16.msra.mxu0 %v222
    %243 = vmatprep.subr.bf16.mxu0 0
    %244 = vmatpush1.bf16.msra.mxu0 %v223
    %245 = vmatprep.subr.bf16.mxu0 0
    %246 = vmatpush1.bf16.msra.mxu0 %v224
    %247 = vmatprep.subr.bf16.mxu0 0
    %248 = vmatpush1.bf16.msra.mxu0 %v225
    %249 = vmatprep.subr.bf16.mxu0 0
    %250 = vmatpush1.bf16.msra.mxu0 %v226
    %251 = vmatprep.subr.bf16.mxu0 0
    %252 = vmatpush1.bf16.msra.mxu0 0
    %253 = vmatprep.subr.bf16.mxu0 0
    %254 = vmatpush1.bf16.msra.mxu0 0
    %255 = vmatprep.subr.bf16.mxu0 0
    %256 = vmatpush1.bf16.msra.mxu0 0
    %257 = vmatprep.subr.bf16.mxu0 0
    %258 = vmatpush1.bf16.msra.mxu0 0
    %259 = vmatprep.subr.bf16.mxu0 0
    %260 = vmatpush1.bf16.msra.mxu0 0
    %261 = vmatprep.subr.bf16.mxu0 0
    %262 = vmatpush1.bf16.msra.mxu0 0
    %263 = vmatprep.subr.bf16.mxu0 0
    %264 = vmatpush1.bf16.msra.mxu0 0
    %265 = vmatprep.subr.bf16.mxu0 0
    %266 = vmatpush1.bf16.msra.mxu0 0
    %267 = vmatprep.mubr.bf16.mxu0 0
    %268 = vmatmul.mubr.bf16.gmra.mrb[0].mxu0 %v164
    %v269 = vpop.f32.mrb[0].mxu0
    %v270 = vadd.f32 %v185, %v269
    %v271 = vpop.f32.mrb[0].mxu0
    %v272 = vpop.f32.mrb[0].mxu0
    %v273 = vpop.f32.mrb[0].mxu0
    %274 = vdwg.mxu0
    %v275 = vmax.f32 %v270, 0.0
    %v276 = vpack.c.bf16 %v275, %v275
    %v277 = vld [vmem:[#allocation7] sm:$0xf]
    %v278 = vld [vmem:[#allocation7 + $0x4] sm:$0xf]
    %v279 = vld [vmem:[#allocation7 + $0x8] sm:$0xf]
    %v280 = vld [vmem:[#allocation7 + $0xc] sm:$0xf]
    %v281 = vld [vmem:[#allocation7 + $0x10] sm:$0xf]
    %v282 = vld [vmem:[#allocation7 + $0x14] sm:$0xf]
    %v283 = vld [vmem:[#allocation7 + $0x18] sm:$0xf]
    %v284 = vld [vmem:[#allocation7 + $0x1c] sm:$0xf]
    %v285 = vld [vmem:[#allocation7 + $0x20] sm:$0xf]
    %v286 = vld [vmem:[#allocation7 + $0x24] sm:$0xf]
    %v287 = vld [vmem:[#allocation7 + $0x28] sm:$0xf]
    %v288 = vld [vmem:[#allocation7 + $0x2c] sm:$0xf]
    %v289 = vld [vmem:[#allocation7 + $0x30] sm:$0xf]
    %v290 = vld [vmem:[#allocation7 + $0x34] sm:$0xf]
    %v291 = vld [vmem:[#allocation7 + $0x38] sm:$0xf]
    %v292 = vld [vmem:[#allocation7 + $0x3c] sm:$0xf]
    %v294 = vlaneseq
    %v295 = vshrl.u32 %v294, 7
    %v296 = vsub.s32 0, %v295
    %v297 = vrot.slane %v101, %v296
    %v315 = vunpack.c.l.b16 %v277
    %v316 = vunpack.c.l.b16 %v278
    %v317 = vunpack.c.l.b16 %v279
    %v318 = vunpack.c.l.b16 %v280
    %v319 = vunpack.c.l.b16 %v281
    %v320 = vunpack.c.l.b16 %v282
    %v321 = vunpack.c.l.b16 %v283
    %v322 = vunpack.c.l.b16 %v284
    %v323 = vunpack.c.l.b16 %v285
    %v324 = vunpack.c.l.b16 %v286
    %v325 = vunpack.c.l.b16 %v287
    %v326 = vunpack.c.l.b16 %v288
    %v327 = vunpack.c.l.b16 %v289
    %v328 = vunpack.c.l.b16 %v290
    %v329 = vunpack.c.l.b16 %v291
    %v330 = vunpack.c.l.b16 %v292
    %v331 = vpack.c.b16 %v316, %v315
    %v332 = vpack.c.b16 %v318, %v317
    %v333 = vpack.c.b16 %v320, %v319
    %v334 = vpack.c.b16 %v322, %v321
    %v335 = vpack.c.b16 %v324, %v323
    %v336 = vpack.c.b16 %v326, %v325
    %v337 = vpack.c.b16 %v328, %v327
    %v338 = vpack.c.b16 %v330, %v329
    %347 = vmatprep.subr.bf16.mxu0 0
    %348 = vmatpush1.bf16.msra.mxu0 %v331
    %349 = vmatprep.subr.bf16.mxu0 0
    %350 = vmatpush1.bf16.msra.mxu0 %v332
    %351 = vmatprep.subr.bf16.mxu0 0
    %352 = vmatpush1.bf16.msra.mxu0 %v333
    %353 = vmatprep.subr.bf16.mxu0 0
    %354 = vmatpush1.bf16.msra.mxu0 %v334
    %355 = vmatprep.subr.bf16.mxu0 0
    %356 = vmatpush1.bf16.msra.mxu0 %v335
    %357 = vmatprep.subr.bf16.mxu0 0
    %358 = vmatpush1.bf16.msra.mxu0 %v336
    %359 = vmatprep.subr.bf16.mxu0 0
    %360 = vmatpush1.bf16.msra.mxu0 %v337
    %361 = vmatprep.subr.bf16.mxu0 0
    %362 = vmatpush1.bf16.msra.mxu0 %v338
    %363 = vmatprep.subr.bf16.mxu0 0
    %364 = vmatpush1.bf16.msra.mxu0 0
    %365 = vmatprep.subr.bf16.mxu0 0
    %366 = vmatpush1.bf16.msra.mxu0 0
    %367 = vmatprep.subr.bf16.mxu0 0
    %368 = vmatpush1.bf16.msra.mxu0 0
    %369 = vmatprep.subr.bf16.mxu0 0
    %370 = vmatpush1.bf16.msra.mxu0 0
    %371 = vmatprep.subr.bf16.mxu0 0
    %372 = vmatpush1.bf16.msra.mxu0 0
    %373 = vmatprep.subr.bf16.mxu0 0
    %374 = vmatpush1.bf16.msra.mxu0 0
    %375 = vmatprep.subr.bf16.mxu0 0
    %376 = vmatpush1.bf16.msra.mxu0 0
    %377 = vmatprep.subr.bf16.mxu0 0
    %378 = vmatpush1.bf16.msra.mxu0 0
    %379 = vmatprep.mubr.bf16.mxu0 0
    %380 = vmatmul.mubr.bf16.gmra.mrb[0].mxu0 %v276
    %v381 = vpop.f32.mrb[0].mxu0
    %v382 = vadd.f32 %v297, %v381
    %v383 = vpop.f32.mrb[0].mxu0
    %v384 = vpop.f32.mrb[0].mxu0
    %v385 = vpop.f32.mrb[0].mxu0
    %386 = vdwg.mxu0
    %v387 = vmax.f32 %v382, 0.0
    %v388 = vpack.c.bf16 %v387, %v387
    %v389 = vld [vmem:[#allocation9] sm:$0xf]
    %v390 = vld [vmem:[#allocation9 + $0x4] sm:$0xf]
    %v391 = vld [vmem:[#allocation9 + $0x8] sm:$0xf]
    %v392 = vld [vmem:[#allocation9 + $0xc] sm:$0xf]
    %v393 = vld [vmem:[#allocation9 + $0x10] sm:$0xf]
    %v394 = vld [vmem:[#allocation9 + $0x14] sm:$0xf]
    %v395 = vld [vmem:[#allocation9 + $0x18] sm:$0xf]
    %v396 = vld [vmem:[#allocation9 + $0x1c] sm:$0xf]
    %v397 = vld [vmem:[#allocation9 + $0x20] sm:$0xf]
    %v398 = vld [vmem:[#allocation9 + $0x24] sm:$0xf]
    %v399 = vld [vmem:[#allocation9 + $0x28] sm:$0xf]
    %v400 = vld [vmem:[#allocation9 + $0x2c] sm:$0xf]
    %v401 = vld [vmem:[#allocation9 + $0x30] sm:$0xf]
    %v402 = vld [vmem:[#allocation9 + $0x34] sm:$0xf]
    %v403 = vld [vmem:[#allocation9 + $0x38] sm:$0xf]
    %v404 = vld [vmem:[#allocation9 + $0x3c] sm:$0xf]
    %v406 = vlaneseq
    %v407 = vshrl.u32 %v406, 7
    %v408 = vsub.s32 0, %v407
    %v409 = vrot.slane %v102, %v408
    %v427 = vunpack.c.l.b16 %v389
    %v428 = vunpack.c.l.b16 %v390
    %v429 = vunpack.c.l.b16 %v391
    %v430 = vunpack.c.l.b16 %v392
    %v431 = vunpack.c.l.b16 %v393
    %v432 = vunpack.c.l.b16 %v394
    %v433 = vunpack.c.l.b16 %v395
    %v434 = vunpack.c.l.b16 %v396
    %v435 = vunpack.c.l.b16 %v397
    %v436 = vunpack.c.l.b16 %v398
    %v437 = vunpack.c.l.b16 %v399
    %v438 = vunpack.c.l.b16 %v400
    %v439 = vunpack.c.l.b16 %v401
    %v440 = vunpack.c.l.b16 %v402
    %v441 = vunpack.c.l.b16 %v403
    %v442 = vunpack.c.l.b16 %v404
    %v443 = vpack.c.b16 %v428, %v427
    %v444 = vpack.c.b16 %v430, %v429
    %v445 = vpack.c.b16 %v432, %v431
    %v446 = vpack.c.b16 %v434, %v433
    %v447 = vpack.c.b16 %v436, %v435
    %v448 = vpack.c.b16 %v438, %v437
    %v449 = vpack.c.b16 %v440, %v439
    %v450 = vpack.c.b16 %v442, %v441
    %459 = vmatprep.subr.bf16.mxu0 0
    %460 = vmatpush1.bf16.msra.mxu0 %v443
    %461 = vmatprep.subr.bf16.mxu0 0
    %462 = vmatpush1.bf16.msra.mxu0 %v444
    %463 = vmatprep.subr.bf16.mxu0 0
    %464 = vmatpush1.bf16.msra.mxu0 %v445
    %465 = vmatprep.subr.bf16.mxu0 0
    %466 = vmatpush1.bf16.msra.mxu0 %v446
    %467 = vmatprep.subr.bf16.mxu0 0
    %468 = vmatpush1.bf16.msra.mxu0 %v447
    %469 = vmatprep.subr.bf16.mxu0 0
    %470 = vmatpush1.bf16.msra.mxu0 %v448
    %471 = vmatprep.subr.bf16.mxu0 0
    %472 = vmatpush1.bf16.msra.mxu0 %v449
    %473 = vmatprep.subr.bf16.mxu0 0
    %474 = vmatpush1.bf16.msra.mxu0 %v450
    %475 = vmatprep.subr.bf16.mxu0 0
    %476 = vmatpush1.bf16.msra.mxu0 0
    %477 = vmatprep.subr.bf16.mxu0 0
    %478 = vmatpush1.bf16.msra.mxu0 0
    %479 = vmatprep.subr.bf16.mxu0 0
    %480 = vmatpush1.bf16.msra.mxu0 0
    %481 = vmatprep.subr.bf16.mxu0 0
    %482 = vmatpush1.bf16.msra.mxu0 0
    %483 = vmatprep.subr.bf16.mxu0 0
    %484 = vmatpush1.bf16.msra.mxu0 0
    %485 = vmatprep.subr.bf16.mxu0 0
    %486 = vmatpush1.bf16.msra.mxu0 0
    %487 = vmatprep.subr.bf16.mxu0 0
    %488 = vmatpush1.bf16.msra.mxu0 0
    %489 = vmatprep.subr.bf16.mxu0 0
    %490 = vmatpush1.bf16.msra.mxu0 0
    %491 = vmatprep.mubr.bf16.mxu0 0
    %492 = vmatmul.mubr.bf16.gmra.mrb[0].mxu0 %v388
    %v493 = vpop.f32.mrb[0].mxu0
    %v494 = vadd.f32 %v409, %v493
    %v495 = vpop.f32.mrb[0].mxu0
    %v496 = vpop.f32.mrb[0].mxu0
    %v497 = vpop.f32.mrb[0].mxu0
    %498 = vdwg.mxu0
    %v499 = vsub.f32 0.0, %v494
    %v500 = vmul.f32 %v499, 1.442695
    %v501 = vpow.pop %v500
    %v502 = vadd.f32 %v501, 1.0
    %v503 = vrcp.pop %v502
    %vm504 = vcmask 7168
    %505 = vst.msk [vmem:[%s9] sm:$0xff] %vm504, %v503
    // Predicated region
    $region58: #{tpu_custom_call.1} parent=1 // pred_check
      _
    $region59: #{tpu_custom_call.1} parent=1 // pred_check_branch
      %507 = sbr.rel (0) target = $region61
    $region60: #{tpu_custom_call.1} parent=1 // pred_region
      _
    $region61: #{tpu_custom_call.1} parent=1 // pred_fallthru
      _
    // Predicated region
    $region62: #{tpu_custom_call.1} parent=1 // pred_check
      _
    $region63: #{tpu_custom_call.1} parent=1 // pred_check_branch
      %509 = sbr.rel (0) target = $region65
    $region64: #{tpu_custom_call.1} parent=1 // pred_region
      _
    $region65: #{tpu_custom_call.1} parent=1 // pred_fallthru
      _
    %510 = vsyncpa [#allocation3], 1
    %511 = vsyncpa [#allocation5], 1
    %512 = vsyncpa [#allocation8], 1

</llo_original>
